<compile_context>
chip_gen: v6e
topology: v6e:2x2x1
jax: 0.10.0
libtpu: 0.0.40
codegen_flags: <defaults>
</compile_context>

<pallas_src>
import functools

import jax
import jax.numpy as jnp
from jax.experimental import pallas as pl
from jax.experimental.pallas import tpu as pltpu

_LANE = 128


def _round_up(n, m):
    return (n + m - 1) // m * m


def _decoding_block_kernel(cat_ref, t_ref,
                           w1_ref, b1_ref,
                           wt_ref, bt_ref,
                           w2_ref, b2_ref,
                           out_ref):
    # layer1: Linear(2*D -> Dp) on the pre-concatenated [skip, x] tile, then ReLU.
    h = jnp.dot(cat_ref[...], w1_ref[...], preferred_element_type=jnp.float32)
    h = jnp.maximum(h + b1_ref[...], 0.0)            # b1 is (1, Dp), broadcasts over batch

    # temb_proj: Linear(E -> Dp) + ReLU, added to h (epilogue kept in f32).
    te = jnp.dot(t_ref[...], wt_ref[...], preferred_element_type=jnp.float32)
    h = h + jnp.maximum(te + bt_ref[...], 0.0)

    # layer2: Linear(Dp -> Np) + ReLU.  Padded h columns are exactly zero, so the
    # zero-padded W2 rows do not change the unpadded outputs.
    o = jnp.dot(h.astype(w2_ref.dtype), w2_ref[...],
                preferred_element_type=jnp.float32)
    out_ref[...] = jnp.maximum(o + b2_ref[...], 0.0).astype(out_ref.dtype)


def pack_params(params, input_dim, output_dim):
    """One-time packing: pad all output-lane feature dims to multiples of 128 so every
    in-kernel matmul N-dim / store is lane-dense, and cast MXU weight operands to bf16.
    Biases stay f32 (they are added in the f32 epilogue)."""
    D, Dout = input_dim, output_dim
    Dp = _round_up(D, _LANE)
    Np = _round_up(Dout, _LANE)

    def pad2(a, rows, cols):
        return jnp.pad(a, ((0, rows - a.shape[0]), (0, cols - a.shape[1])))

    return {
        "w1": pad2(params["w1"], 2 * D, Dp).astype(jnp.bfloat16),              # (2D, Dp)
        "b1": pad2(params["b1"], 1, Dp),                                       # (1, Dp) f32
        "wt": pad2(params["wt"], params["wt"].shape[0], Dp).astype(jnp.bfloat16),
        "bt": pad2(params["bt"], 1, Dp),
        "w2": pad2(params["w2"], Dp, Np).astype(jnp.bfloat16),                 # (Dp, Np)
        "b2": pad2(params["b2"], 1, Np),
        "out_dim": Dout,
    }


@functools.partial(jax.jit, static_argnames=("out_dim",))
def _decoding_block_call(skip, x, t, w1, b1, wt, bt, w2, b2, *, out_dim):
    # Concat + bf16 cast fuse into a single XLA op feeding the kernel: one K=2D MXU pass
    # in the kernel, HBM->VMEM activation bytes halved (accumulation stays f32 in-kernel).
    cat = jnp.concatenate([skip, x], axis=1).astype(jnp.bfloat16)
    t_bf = t.astype(jnp.bfloat16)

    B, K1 = cat.shape
    E = t_bf.shape[1]
    Np = w2.shape[1]

    # Batch tile: large enough to amortize per-step overhead / keep the HBM pipe busy,
    # small enough that double-buffered activation tiles + resident weights fit scoped
    # VMEM on every generation (incl. v7x's 64 MiB).  For B <= 512 the block equals the
    # full batch, which also satisfies the (8,128) block constraint at tiny demo sizes.
    TB = B if B <= 512 else 512
    grid = (pl.cdiv(B, TB),)

    act = lambda cols: pl.BlockSpec((TB, cols), lambda i: (i, 0))
    resident = lambda shape: pl.BlockSpec(shape, lambda i: (0, 0))

    out = pl.pallas_call(
        _decoding_block_kernel,
        out_shape=jax.ShapeDtypeStruct((B, Np), jnp.float32),
        grid=grid,
        in_specs=[
            act(K1),                      # [skip, x] concatenated, bf16
            act(E),                       # t, bf16
            resident(w1.shape), resident(b1.shape),
            resident(wt.shape), resident(bt.shape),
            resident(w2.shape), resident(b2.shape),
        ],
        out_specs=act(Np),
        compiler_params=pltpu.CompilerParams(
            dimension_semantics=("parallel",),      # shard batch across TCs (v7x megacore)
            vmem_limit_bytes=32 * 1024 * 1024,
        ),
    )(cat, t_bf, w1, b1, wt, bt, w2, b2)

    return out[:, :out_dim]


def decoding_block(skip, x, t, packed):
    """skip, x: (B, D) f32; t: (B, E) f32; packed = pack_params(...) -> (B, Dout) f32."""
    return _decoding_block_call(skip, x, t,
                                packed["w1"], packed["b1"],
                                packed["wt"], packed["bt"],
                                packed["w2"], packed["b2"],
                                out_dim=packed["out_dim"])


def decoding_block_ref(skip, x, t, params):
    """Plain-JAX f32 reference mirroring the PyTorch forward."""
    h_in = jnp.concatenate([skip, x], axis=1)
    h = jax.nn.relu(h_in @ params["w1"] + params["b1"])
    h = h + jax.nn.relu(t @ params["wt"] + params["bt"])
    return jax.nn.relu(h @ params["w2"] + params["b2"])


def init_params(key, input_dim, output_dim, embed_dim):
    """PyTorch-Linear-style init (uniform +/- 1/sqrt(fan_in)); weights stored (in, out)."""
    ks = jax.random.split(key, 6)

    def lin(kw, kb, fan_in, fan_out):
        bound = 1.0 / (fan_in ** 0.5)
        w = jax.random.uniform(kw, (fan_in, fan_out), jnp.float32, -bound, bound)
        b = jax.random.uniform(kb, (1, fan_out), jnp.float32, -bound, bound)
        return w, b

    w1, b1 = lin(ks[0], ks[1], 2 * input_dim, input_dim)
    wt, bt = lin(ks[2], ks[3], embed_dim, input_dim)
    w2, b2 = lin(ks[4], ks[5], input_dim, output_dim)
    return {"w1": w1, "b1": b1, "wt": wt, "bt": bt, "w2": w2, "b2": b2}


if __name__ == "__main__":
    B, input_dim, output_dim, embed_dim = 8, 32, 16, 24

    key = jax.random.PRNGKey(0)
    k_skip, k_x, k_t, k_p = jax.random.split(key, 4)

    skip = jax.random.normal(k_skip, (B, input_dim), jnp.float32)
    x = jax.random.normal(k_x, (B, input_dim), jnp.float32)
    t = jax.random.normal(k_t, (B, embed_dim), jnp.float32)

    params = init_params(k_p, input_dim, output_dim, embed_dim)
    packed = pack_params(params, input_dim, output_dim)   # one-time pad + bf16 cast

    out = decoding_block(skip, x, t, packed)
    jax.block_until_ready(out)

    ref = decoding_block_ref(skip, x, t, params)
    assert out.shape == (B, output_dim)
    # bf16 MXU operands with f32 accumulation -> loosened tolerance vs. the f32 reference.
    assert jnp.allclose(out, ref, atol=6e-2, rtol=6e-2), "mismatch vs reference"

    print("KERNEL_OK")
</pallas_src>

<mosaic_0001>
module attributes {stable_mosaic.version = 11 : i64} {
  func.func @_decoding_block_kernel(%arg0: i32, %arg1: memref<8x64xbf16, #tpu.memory_space<vmem>>, %arg2: memref<8x24xbf16, #tpu.memory_space<vmem>>, %arg3: memref<64x128xbf16, #tpu.memory_space<vmem>>, %arg4: memref<1x128xf32, #tpu.memory_space<vmem>>, %arg5: memref<24x128xbf16, #tpu.memory_space<vmem>>, %arg6: memref<1x128xf32, #tpu.memory_space<vmem>>, %arg7: memref<128x128xbf16, #tpu.memory_space<vmem>>, %arg8: memref<1x128xf32, #tpu.memory_space<vmem>>, %arg9: memref<8x128xf32, #tpu.memory_space<vmem>>) attributes {dimension_semantics = [#tpu.dimension_semantics<parallel>], iteration_bounds = array<i64: 1>, scalar_prefetch = 0 : i64, scratch_operands = 0 : i64, tpu.core_type = #tpu.core_type<tc>, window_params = [{transform_indices = @transform_0, window_bounds = array<i64: 8, 64>}, {transform_indices = @transform_1, window_bounds = array<i64: 8, 24>}, {pipeline_mode = #tpu.pipeline_mode<synchronous>, transform_indices = @transform_2, window_bounds = array<i64: 64, 128>}, {pipeline_mode = #tpu.pipeline_mode<synchronous>, transform_indices = @transform_3, window_bounds = array<i64: 1, 128>}, {pipeline_mode = #tpu.pipeline_mode<synchronous>, transform_indices = @transform_4, window_bounds = array<i64: 24, 128>}, {pipeline_mode = #tpu.pipeline_mode<synchronous>, transform_indices = @transform_5, window_bounds = array<i64: 1, 128>}, {pipeline_mode = #tpu.pipeline_mode<synchronous>, transform_indices = @transform_6, window_bounds = array<i64: 128, 128>}, {pipeline_mode = #tpu.pipeline_mode<synchronous>, transform_indices = @transform_7, window_bounds = array<i64: 1, 128>}, {transform_indices = @transform_8, window_bounds = array<i64: 8, 128>}]} {
    %c0 = arith.constant 0 : index
    %c0_0 = arith.constant 0 : index
    %0 = vector.load %arg1[%c0, %c0_0] : memref<8x64xbf16, #tpu.memory_space<vmem>>, vector<8x64xbf16>
    %c0_1 = arith.constant 0 : index
    %c0_2 = arith.constant 0 : index
    %1 = vector.load %arg3[%c0_1, %c0_2] : memref<64x128xbf16, #tpu.memory_space<vmem>>, vector<64x128xbf16>
    %cst = arith.constant dense<0.000000e+00> : vector<8x128xf32>
    %2 = tpu.matmul %0, %1, %cst {dimension_numbers = #tpu.dot_dimension_numbers<[1], [0], [0], [1], [0, 0, 1, 1], [], []>} : vector<8x64xbf16>, vector<64x128xbf16>, vector<8x128xf32> -> vector<8x128xf32>
    %c0_3 = arith.constant 0 : index
    %c0_4 = arith.constant 0 : index
    %3 = vector.load %arg4[%c0_3, %c0_4] : memref<1x128xf32, #tpu.memory_space<vmem>>, vector<1x128xf32>
    %4 = vector.broadcast %3 : vector<1x128xf32> to vector<8x128xf32>
    %5 = arith.addf %2, %4 : vector<8x128xf32>
    %cst_5 = arith.constant 0.000000e+00 : f32
    %6 = vector.broadcast %cst_5 : f32 to vector<8x128xf32>
    %7 = arith.maximumf %5, %6 : vector<8x128xf32>
    %c0_6 = arith.constant 0 : index
    %c0_7 = arith.constant 0 : index
    %8 = vector.load %arg2[%c0_6, %c0_7] : memref<8x24xbf16, #tpu.memory_space<vmem>>, vector<8x24xbf16>
    %c0_8 = arith.constant 0 : index
    %c0_9 = arith.constant 0 : index
    %9 = vector.load %arg5[%c0_8, %c0_9] : memref<24x128xbf16, #tpu.memory_space<vmem>>, vector<24x128xbf16>
    %cst_10 = arith.constant dense<0.000000e+00> : vector<8x128xf32>
    %10 = tpu.matmul %8, %9, %cst_10 {dimension_numbers = #tpu.dot_dimension_numbers<[1], [0], [0], [1], [0, 0, 1, 1], [], []>} : vector<8x24xbf16>, vector<24x128xbf16>, vector<8x128xf32> -> vector<8x128xf32>
    %c0_11 = arith.constant 0 : index
    %c0_12 = arith.constant 0 : index
    %11 = vector.load %arg6[%c0_11, %c0_12] : memref<1x128xf32, #tpu.memory_space<vmem>>, vector<1x128xf32>
    %12 = vector.broadcast %11 : vector<1x128xf32> to vector<8x128xf32>
    %13 = arith.addf %10, %12 : vector<8x128xf32>
    %cst_13 = arith.constant 0.000000e+00 : f32
    %14 = vector.broadcast %cst_13 : f32 to vector<8x128xf32>
    %15 = arith.maximumf %13, %14 : vector<8x128xf32>
    %16 = arith.addf %7, %15 : vector<8x128xf32>
    %17 = arith.truncf %16 : vector<8x128xf32> to vector<8x128xbf16>
    %c0_14 = arith.constant 0 : index
    %c0_15 = arith.constant 0 : index
    %18 = vector.load %arg7[%c0_14, %c0_15] : memref<128x128xbf16, #tpu.memory_space<vmem>>, vector<128x128xbf16>
    %cst_16 = arith.constant dense<0.000000e+00> : vector<8x128xf32>
    %19 = tpu.matmul %17, %18, %cst_16 {dimension_numbers = #tpu.dot_dimension_numbers<[1], [0], [0], [1], [0, 0, 1, 1], [], []>} : vector<8x128xbf16>, vector<128x128xbf16>, vector<8x128xf32> -> vector<8x128xf32>
    %c0_17 = arith.constant 0 : index
    %c0_18 = arith.constant 0 : index
    %20 = vector.load %arg8[%c0_17, %c0_18] : memref<1x128xf32, #tpu.memory_space<vmem>>, vector<1x128xf32>
    %21 = vector.broadcast %20 : vector<1x128xf32> to vector<8x128xf32>
    %22 = arith.addf %19, %21 : vector<8x128xf32>
    %cst_19 = arith.constant 0.000000e+00 : f32
    %23 = vector.broadcast %cst_19 : f32 to vector<8x128xf32>
    %24 = arith.maximumf %22, %23 : vector<8x128xf32>
    %c0_20 = arith.constant 0 : index
    %c0_21 = arith.constant 0 : index
    %25 = vector.load %arg9[%c0_20, %c0_21] : memref<8x128xf32, #tpu.memory_space<vmem>>, vector<8x128xf32>
    tpu.vector_store %arg9[%c0_20, %c0_21], %24 {strides = array<i32>} : memref<8x128xf32, #tpu.memory_space<vmem>>, vector<8x128xf32>,
    return
  }
  func.func @transform_0(%arg0: i32) -> (i32, i32) {
    %c0_i32 = arith.constant 0 : i32
    %c0_i32_0 = arith.constant 0 : i32
    return %arg0, %c0_i32 : i32, i32
  }
  func.func @transform_1(%arg0: i32) -> (i32, i32) {
    %c0_i32 = arith.constant 0 : i32
    %c0_i32_0 = arith.constant 0 : i32
    return %arg0, %c0_i32 : i32, i32
  }
  func.func @transform_2(%arg0: i32) -> (i32, i32) {
    %c0_i32 = arith.constant 0 : i32
    %c0_i32_0 = arith.constant 0 : i32
    %c0_i32_1 = arith.constant 0 : i32
    return %c0_i32, %c0_i32_0 : i32, i32
  }
  func.func @transform_3(%arg0: i32) -> (i32, i32) {
    %c0_i32 = arith.constant 0 : i32
    %c0_i32_0 = arith.constant 0 : i32
    %c0_i32_1 = arith.constant 0 : i32
    return %c0_i32, %c0_i32_0 : i32, i32
  }
  func.func @transform_4(%arg0: i32) -> (i32, i32) {
    %c0_i32 = arith.constant 0 : i32
    %c0_i32_0 = arith.constant 0 : i32
    %c0_i32_1 = arith.constant 0 : i32
    return %c0_i32, %c0_i32_0 : i32, i32
  }
  func.func @transform_5(%arg0: i32) -> (i32, i32) {
    %c0_i32 = arith.constant 0 : i32
    %c0_i32_0 = arith.constant 0 : i32
    %c0_i32_1 = arith.constant 0 : i32
    return %c0_i32, %c0_i32_0 : i32, i32
  }
  func.func @transform_6(%arg0: i32) -> (i32, i32) {
    %c0_i32 = arith.constant 0 : i32
    %c0_i32_0 = arith.constant 0 : i32
    %c0_i32_1 = arith.constant 0 : i32
    return %c0_i32, %c0_i32_0 : i32, i32
  }
  func.func @transform_7(%arg0: i32) -> (i32, i32) {
    %c0_i32 = arith.constant 0 : i32
    %c0_i32_0 = arith.constant 0 : i32
    %c0_i32_1 = arith.constant 0 : i32
    return %c0_i32, %c0_i32_0 : i32, i32
  }
  func.func @transform_8(%arg0: i32) -> (i32, i32) {
    %c0_i32 = arith.constant 0 : i32
    %c0_i32_0 = arith.constant 0 : i32
    return %arg0, %c0_i32 : i32, i32
  }
}

</mosaic_0001>

<llo_original>
// kernel: _decoding_block_call.1
$region0: #{_decoding_block_call.1}
  #allocation0 [shape = 'u32[]', space=smem, size = 0x4, offset = 0x4, fixed_abs, tag = 'smem constant byte address 0x4 - core index']
  #allocation1 [shape = 'u32[144,128]{1,0:T(1,128)}', space=vmem, size = 0x12000, scoped, tag = 'internal scratch']
  %s0 = inlined_call_operand.vmem [shape: bf16[8,64], index: 0, kind: input, shape index: {}]
  %s1 = inlined_call_operand.vmem [shape: bf16[8,24], index: 1, kind: input, shape index: {}]
  %s2 = inlined_call_operand.vmem [shape: bf16[64,128], index: 2, kind: input, shape index: {}]
  %s3 = inlined_call_operand.vmem [shape: f32[1,128], index: 3, kind: input, shape index: {}]
  %s4 = inlined_call_operand.vmem [shape: bf16[24,128], index: 4, kind: input, shape index: {}]
  %s5 = inlined_call_operand.vmem [shape: f32[1,128], index: 5, kind: input, shape index: {}]
  %s6 = inlined_call_operand.hbm [shape: bf16[128,128], index: 6, kind: input, shape index: {}]
  %s7 = inlined_call_operand.vmem [shape: f32[1,128], index: 7, kind: input, shape index: {}]
  %s8 = inlined_call_operand.hbm [shape: f32[8,128], index: 8, kind: output, shape index: {}]
  %s9 = sld [smem:[#allocation0]]
  $region46: #{_decoding_block_call.1} parent=0
    _
  %s11 = ssub.s32 1, %s9
  %s12 = scalar_select 0, %s11, %s9
  $region1: #{_decoding_block_call.1} parent=0
    #allocation2 [shape = 'u8[32768]{0}', space=vmem, size = 0x8000, scoped, tag = 'input window, operand 6, single buffered']
    #allocation3 [shape = 's32[1]{0}', space=sflag, size = 0x4, scoped, tag = 'scoped memory for _decoding_block_call.1']
    #allocation4 [shape = 's32[1]{0}', space=sflag, size = 0x4, scoped, tag = 'scoped memory for _decoding_block_call.1']
    #allocation5 [shape = 'u8[4096]{0}', space=vmem, size = 0x1000, scoped, tag = 'output window, operand 0, single buffered']
    %13 = vsyncpa [#allocation3], 0
    %14 = vsyncpa [#allocation4], 0
    // Predicated region
    $region2: #{_decoding_block_call.1} parent=1 // pred_check
      _
    $region3: #{_decoding_block_call.1} parent=1 // pred_check_branch
      %16 = sbr.rel (0) target = $region5
    $region4: #{_decoding_block_call.1} parent=1 // pred_region
      _
    $region5: #{_decoding_block_call.1} parent=1 // pred_fallthru
      _
    // Predicated region
    $region6: #{_decoding_block_call.1} parent=1 // pred_check
      _
    $region7: #{_decoding_block_call.1} parent=1 // pred_check_branch
      %18 = sbr.rel (0) target = $region9
    $region8: #{_decoding_block_call.1} parent=1 // pred_region
      _
    $region9: #{_decoding_block_call.1} parent=1 // pred_fallthru
      _
    // Predicated region
    $region10: #{_decoding_block_call.1} parent=1 // pred_check
      _
    $region11: #{_decoding_block_call.1} parent=1 // pred_check_branch
      %20 = sbr.rel (0) target = $region13
    $region12: #{_decoding_block_call.1} parent=1 // pred_region
      _
    $region13: #{_decoding_block_call.1} parent=1 // pred_fallthru
      _
    // Predicated region
    $region14: #{_decoding_block_call.1} parent=1 // pred_check
      _
    $region15: #{_decoding_block_call.1} parent=1 // pred_check_branch
      %22 = sbr.rel (0) target = $region17
    $region16: #{_decoding_block_call.1} parent=1 // pred_region
      _
    $region17: #{_decoding_block_call.1} parent=1 // pred_fallthru
      _
    // Predicated region
    $region18: #{_decoding_block_call.1} parent=1 // pred_check
      _
    $region19: #{_decoding_block_call.1} parent=1 // pred_check_branch
      %24 = sbr.rel (0) target = $region21
    $region20: #{_decoding_block_call.1} parent=1 // pred_region
      _
    $region21: #{_decoding_block_call.1} parent=1 // pred_fallthru
      _
    // Predicated region
    $region22: #{_decoding_block_call.1} parent=1 // pred_check
      _
    $region23: #{_decoding_block_call.1} parent=1 // pred_check_branch
      %26 = sbr.rel (0) target = $region25
    $region24: #{_decoding_block_call.1} parent=1 // pred_region
      _
    $region25: #{_decoding_block_call.1} parent=1 // pred_fallthru
      _
    // Predicated region
    $region26: #{_decoding_block_call.1} parent=1 // pred_check
      _
    $region27: #{_decoding_block_call.1} parent=1 // pred_check_branch
      %28 = sbr.rel (0) target = $region29
    $region28: #{_decoding_block_call.1} parent=1 // pred_region
      %s30 = ssub.s32 1024, 1024
      %31 = vsyncadd [#allocation3], %s30
      %s32 = sshll.u32 [#allocation2], 4
      %s33 = int_to_ptr.vmem [resolvable:$true] %s32
      %38 = dma.hbm_to_vmem [thread:$0]  %s6, 1024, %s33, [#allocation3], 64, 64, 4
    $region29: #{_decoding_block_call.1} parent=1 // pred_fallthru
      _
    // Predicated region
    $region30: #{_decoding_block_call.1} parent=1 // pred_check
      _
    $region31: #{_decoding_block_call.1} parent=1 // pred_check_branch
      %40 = sbr.rel (0) target = $region33
    $region32: #{_decoding_block_call.1} parent=1 // pred_region
      _
    $region33: #{_decoding_block_call.1} parent=1 // pred_fallthru
      _
    // Predicated region
    $region34: #{_decoding_block_call.1} parent=1 // pred_check
      _
    $region35: #{_decoding_block_call.1} parent=1 // pred_check_branch
      %42 = sbr.rel (0) target = $region37
    $region36: #{_decoding_block_call.1} parent=1 // pred_region
      %43 = dma.done [#allocation3], 1024
    $region37: #{_decoding_block_call.1} parent=1 // pred_fallthru
      _
    %v45 = vld [vmem:[%s0] sm:$0xf]
    %v46 = vld [vmem:[%s2] sm:$0xf]
    %v47 = vld [vmem:[%s2 + $0x4] sm:$0xf]
    %v48 = vld [vmem:[%s2 + $0x8] sm:$0xf]
    %v49 = vld [vmem:[%s2 + $0xc] sm:$0xf]
    %v50 = vld [vmem:[%s2 + $0x10] sm:$0xf]
    %v51 = vld [vmem:[%s2 + $0x14] sm:$0xf]
    %v52 = vld [vmem:[%s2 + $0x18] sm:$0xf]
    %v53 = vld [vmem:[%s2 + $0x1c] sm:$0xf]
    %v54 = vld [vmem:[%s3] sm:$0x1]
    %v56 = vlaneseq
    %v57 = vshrl.u32 %v56, 7
    %v58 = vsub.s32 0, %v57
    %v59 = vrot.slane %v54, %v58
    %v69 = vunpack.c.l.b16 %v46
    %v70 = vunpack.c.l.b16 %v47
    %v71 = vunpack.c.l.b16 %v48
    %v72 = vunpack.c.l.b16 %v49
    %v73 = vunpack.c.l.b16 %v50
    %v74 = vunpack.c.l.b16 %v51
    %v75 = vunpack.c.l.b16 %v52
    %v76 = vunpack.c.l.b16 %v53
    %v77 = vpack.c.b16 %v70, %v69
    %v78 = vpack.c.b16 %v72, %v71
    %v79 = vpack.c.b16 %v74, %v73
    %v80 = vpack.c.b16 %v76, %v75
    %vm85 = vcmask 523264
    %v87 = vsel %vm85, %v45, 0
    %89 = vmatprep.subr.bf16.mxu0 0
    %90 = vmatpush1.bf16.msra.mxu0 0
    %91 = vmatprep.subr.bf16.mxu0 0
    %92 = vmatpush1.bf16.msra.mxu0 0
    %93 = vmatprep.subr.bf16.mxu0 0
    %94 = vmatpush1.bf16.msra.mxu0 0
    %95 = vmatprep.subr.bf16.mxu0 0
    %96 = vmatpush1.bf16.msra.mxu0 0
    %97 = vmatprep.subr.bf16.mxu0 0
    %98 = vmatpush1.bf16.msra.mxu0 %v80
    %99 = vmatprep.subr.bf16.mxu0 0
    %100 = vmatpush1.bf16.msra.mxu0 %v79
    %101 = vmatprep.subr.bf16.mxu0 0
    %102 = vmatpush1.bf16.msra.mxu0 %v78
    %103 = vmatprep.subr.bf16.mxu0 0
    %104 = vmatpush1.bf16.msra.mxu0 %v77
    %105 = vmatprep.subr.bf16.mxu0 0
    %106 = vmatpush2.bf16.msra.mxu0 0
    %107 = vmatprep.subr.bf16.mxu0 0
    %108 = vmatpush2.bf16.msra.mxu0 0
    %109 = vmatprep.subr.bf16.mxu0 0
    %110 = vmatpush2.bf16.msra.mxu0 0
    %111 = vmatprep.subr.bf16.mxu0 0
    %112 = vmatpush2.bf16.msra.mxu0 0
    %113 = vmatprep.subr.bf16.mxu0 0
    %114 = vmatpush2.bf16.msra.mxu0 0
    %115 = vmatprep.subr.bf16.mxu0 0
    %116 = vmatpush2.bf16.msra.mxu0 0
    %117 = vmatprep.subr.bf16.mxu0 0
    %118 = vmatpush2.bf16.msra.mxu0 0
    %119 = vmatprep.subr.bf16.mxu0 0
    %120 = vmatpush2.bf16.msra.mxu0 0
    %121 = vmatprep.mubr.bf16.mxu0 0
    %122 = vmatmul.mubr.bf16.gmra.mxu0 %v87
    %v123 = vpop.f32.mrf.mxu0
    %v124 = vadd.f32 %v59, %v123
    %v125 = vpop.f32.mrf.mxu0
    %v126 = vpop.f32.mrf.mxu0
    %v127 = vpop.f32.mrf.mxu0
    %128 = vdwg.mxu0
    %v129 = vmax.f32 %v124, 0.0
    %v130 = vld [vmem:[%s1] sm:$0xf]
    %v131 = vld [vmem:[%s4] sm:$0xf]
    %v132 = vld [vmem:[%s4 + $0x4] sm:$0xf]
    %v133 = vld [vmem:[%s4 + $0x8] sm:$0xf]
    %v134 = vld [vmem:[%s5] sm:$0x1]
    %v136 = vlaneseq
    %v137 = vshrl.u32 %v136, 7
    %v138 = vsub.s32 0, %v137
    %v139 = vrot.slane %v134, %v138
    %v144 = vunpack.c.l.b16 %v131
    %v145 = vunpack.c.l.b16 %v132
    %v146 = vunpack.c.l.b16 %v133
    %v147 = vpack.c.b16 %v145, %v144
    %v148 = vpack.c.b16 %v146, %v146
    %vm150 = vcmask 195584
    %v152 = vsel %vm150, %v130, 0
    %vm154 = vcmask 1043456
    %v156 = vsel %vm154, %v148, 0
    %158 = vmatprep.subr.bf16.mxu0 0
    %159 = vmatpush1.bf16.msra.mxu0 0
    %160 = vmatprep.subr.bf16.mxu0 0
    %161 = vmatpush1.bf16.msra.mxu0 0
    %162 = vmatprep.subr.bf16.mxu0 0
    %163 = vmatpush1.bf16.msra.mxu0 0
    %164 = vmatprep.subr.bf16.mxu0 0
    %165 = vmatpush1.bf16.msra.mxu0 0
    %166 = vmatprep.subr.bf16.mxu0 0
    %167 = vmatpush1.bf16.msra.mxu0 0
    %168 = vmatprep.subr.bf16.mxu0 0
    %169 = vmatpush1.bf16.msra.mxu0 0
    %170 = vmatprep.subr.bf16.mxu0 0
    %171 = vmatpush1.bf16.msra.mxu0 %v156
    %172 = vmatprep.subr.bf16.mxu0 0
    %173 = vmatpush1.bf16.msra.mxu0 %v147
    %174 = vmatprep.subr.bf16.mxu0 0
    %175 = vmatpush2.bf16.msra.mxu0 0
    %176 = vmatprep.subr.bf16.mxu0 0
    %177 = vmatpush2.bf16.msra.mxu0 0
    %178 = vmatprep.subr.bf16.mxu0 0
    %179 = vmatpush2.bf16.msra.mxu0 0
    %180 = vmatprep.subr.bf16.mxu0 0
    %181 = vmatpush2.bf16.msra.mxu0 0
    %182 = vmatprep.subr.bf16.mxu0 0
    %183 = vmatpush2.bf16.msra.mxu0 0
    %184 = vmatprep.subr.bf16.mxu0 0
    %185 = vmatpush2.bf16.msra.mxu0 0
    %186 = vmatprep.subr.bf16.mxu0 0
    %187 = vmatpush2.bf16.msra.mxu0 0
    %188 = vmatprep.subr.bf16.mxu0 0
    %189 = vmatpush2.bf16.msra.mxu0 0
    %190 = vmatprep.mubr.bf16.mxu0 0
    %191 = vmatmul.mubr.bf16.gmra.mxu0 %v152
    %v192 = vpop.f32.mrf.mxu0
    %v193 = vadd.f32 %v139, %v192
    %v194 = vpop.f32.mrf.mxu0
    %v195 = vpop.f32.mrf.mxu0
    %v196 = vpop.f32.mrf.mxu0
    %197 = vdwg.mxu0
    %v198 = vmax.f32 %v193, 0.0
    %v199 = vadd.f32 %v129, %v198
    %v200 = vpack.c.bf16 %v199, %v199
    %v201 = vld [vmem:[#allocation2] sm:$0xf]
    %v202 = vld [vmem:[#allocation2 + $0x4] sm:$0xf]
    %v203 = vld [vmem:[#allocation2 + $0x8] sm:$0xf]
    %v204 = vld [vmem:[#allocation2 + $0xc] sm:$0xf]
    %v205 = vld [vmem:[#allocation2 + $0x10] sm:$0xf]
    %v206 = vld [vmem:[#allocation2 + $0x14] sm:$0xf]
    %v207 = vld [vmem:[#allocation2 + $0x18] sm:$0xf]
    %v208 = vld [vmem:[#allocation2 + $0x1c] sm:$0xf]
    %v209 = vld [vmem:[#allocation2 + $0x20] sm:$0xf]
    %v210 = vld [vmem:[#allocation2 + $0x24] sm:$0xf]
    %v211 = vld [vmem:[#allocation2 + $0x28] sm:$0xf]
    %v212 = vld [vmem:[#allocation2 + $0x2c] sm:$0xf]
    %v213 = vld [vmem:[#allocation2 + $0x30] sm:$0xf]
    %v214 = vld [vmem:[#allocation2 + $0x34] sm:$0xf]
    %v215 = vld [vmem:[#allocation2 + $0x38] sm:$0xf]
    %v216 = vld [vmem:[#allocation2 + $0x3c] sm:$0xf]
    %v217 = vld [vmem:[%s7] sm:$0x1]
    %v219 = vlaneseq
    %v220 = vshrl.u32 %v219, 7
    %v221 = vsub.s32 0, %v220
    %v222 = vrot.slane %v217, %v221
    %v240 = vunpack.c.l.b16 %v201
    %v241 = vunpack.c.l.b16 %v202
    %v242 = vunpack.c.l.b16 %v203
    %v243 = vunpack.c.l.b16 %v204
    %v244 = vunpack.c.l.b16 %v205
    %v245 = vunpack.c.l.b16 %v206
    %v246 = vunpack.c.l.b16 %v207
    %v247 = vunpack.c.l.b16 %v208
    %v248 = vunpack.c.l.b16 %v209
    %v249 = vunpack.c.l.b16 %v210
    %v250 = vunpack.c.l.b16 %v211
    %v251 = vunpack.c.l.b16 %v212
    %v252 = vunpack.c.l.b16 %v213
    %v253 = vunpack.c.l.b16 %v214
    %v254 = vunpack.c.l.b16 %v215
    %v255 = vunpack.c.l.b16 %v216
    %v256 = vpack.c.b16 %v241, %v240
    %v257 = vpack.c.b16 %v243, %v242
    %v258 = vpack.c.b16 %v245, %v244
    %v259 = vpack.c.b16 %v247, %v246
    %v260 = vpack.c.b16 %v249, %v248
    %v261 = vpack.c.b16 %v251, %v250
    %v262 = vpack.c.b16 %v253, %v252
    %v263 = vpack.c.b16 %v255, %v254
    %272 = vmatprep.subr.bf16.mxu0 0
    %273 = vmatpush1.bf16.msra.mxu0 %v263
    %274 = vmatprep.subr.bf16.mxu0 0
    %275 = vmatpush1.bf16.msra.mxu0 %v262
    %276 = vmatprep.subr.bf16.mxu0 0
    %277 = vmatpush1.bf16.msra.mxu0 %v261
    %278 = vmatprep.subr.bf16.mxu0 0
    %279 = vmatpush1.bf16.msra.mxu0 %v260
    %280 = vmatprep.subr.bf16.mxu0 0
    %281 = vmatpush1.bf16.msra.mxu0 %v259
    %282 = vmatprep.subr.bf16.mxu0 0
    %283 = vmatpush1.bf16.msra.mxu0 %v258
    %284 = vmatprep.subr.bf16.mxu0 0
    %285 = vmatpush1.bf16.msra.mxu0 %v257
    %286 = vmatprep.subr.bf16.mxu0 0
    %287 = vmatpush1.bf16.msra.mxu0 %v256
    %288 = vmatprep.subr.bf16.mxu0 0
    %289 = vmatpush2.bf16.msra.mxu0 0
    %290 = vmatprep.subr.bf16.mxu0 0
    %291 = vmatpush2.bf16.msra.mxu0 0
    %292 = vmatprep.subr.bf16.mxu0 0
    %293 = vmatpush2.bf16.msra.mxu0 0
    %294 = vmatprep.subr.bf16.mxu0 0
    %295 = vmatpush2.bf16.msra.mxu0 0
    %296 = vmatprep.subr.bf16.mxu0 0
    %297 = vmatpush2.bf16.msra.mxu0 0
    %298 = vmatprep.subr.bf16.mxu0 0
    %299 = vmatpush2.bf16.msra.mxu0 0
    %300 = vmatprep.subr.bf16.mxu0 0
    %301 = vmatpush2.bf16.msra.mxu0 0
    %302 = vmatprep.subr.bf16.mxu0 0
    %303 = vmatpush2.bf16.msra.mxu0 0
    %304 = vmatprep.mubr.bf16.mxu0 0
    %305 = vmatmul.mubr.bf16.gmra.mxu0 %v200
    %v306 = vpop.f32.mrf.mxu0
    %v307 = vadd.f32 %v222, %v306
    %v308 = vpop.f32.mrf.mxu0
    %v309 = vpop.f32.mrf.mxu0
    %v310 = vpop.f32.mrf.mxu0
    %311 = vdwg.mxu0
    %v312 = vmax.f32 %v307, 0.0
    %313 = vst [vmem:[#allocation5] sm:$0xff] %v312
    // Predicated region
    $region38: #{_decoding_block_call.1} parent=1 // pred_check
      _
    $region39: #{_decoding_block_call.1} parent=1 // pred_check_branch
      %315 = sbr.rel (0) target = $region41
    $region40: #{_decoding_block_call.1} parent=1 // pred_region
      %s317 = ssub.s32 128, 128
      %318 = vsyncadd [#allocation4], %s317
      %s320 = sshll.u32 [#allocation5], 4
      %s321 = int_to_ptr.vmem [resolvable:$true] %s320
      %323 = dma.vmem_to_hbm [thread:$0]  %s321, 128, %s8, [#allocation4]
    $region41: #{_decoding_block_call.1} parent=1 // pred_fallthru
      _
    // Predicated region
    $region42: #{_decoding_block_call.1} parent=1 // pred_check
      _
    $region43: #{_decoding_block_call.1} parent=1 // pred_check_branch
      %325 = sbr.rel (0) target = $region45
    $region44: #{_decoding_block_call.1} parent=1 // pred_region
      %326 = dma.done [#allocation4], 128
    $region45: #{_decoding_block_call.1} parent=1 // pred_fallthru
      _
    %327 = vsyncpa [#allocation3], 1
    %328 = vsyncpa [#allocation4], 1

</llo_original>
